<compile_context>
chip_gen: v6e
topology: v6e:2x2x1
jax: 0.10.0
libtpu: 0.0.40
codegen_flags: <defaults>
</compile_context>

<pallas_src>
import jax
import jax.numpy as jnp
from jax.experimental import pallas as pl
from jax.experimental.pallas import tpu as pltpu

# --- model hyper-parameters (small, tile-friendly shapes) ---
N_USERS = 128
N_ITEMS = 128
EMBED_DIM = 128
N_LAYERS = 1
N_NODES = N_USERS + N_ITEMS


def bm3_forward_kernel(adj_ui_ref, adj_iu_ref, user_ref, item_ref,
                       u_out_ref, i_out_ref):
    """Fused BM3 forward using the bipartite structure of the adjacency.

    adj_ui_ref : [N_USERS, N_ITEMS] bf16  (user->item block of D^-1/2 A D^-1/2)
    adj_iu_ref : [N_ITEMS, N_USERS] bf16  (== adj_ui.T, precomputed in wrapper)
    user_ref   : [N_USERS, EMBED_DIM] bf16 (user_embedding.weight)
    item_ref   : [N_ITEMS, EMBED_DIM] bf16 (item_id_embedding.weight)
    u_out_ref  : [N_USERS, EMBED_DIM] f32
    i_out_ref  : [N_ITEMS, EMBED_DIM] f32
    """
    adj_ui = adj_ui_ref[...]
    adj_iu = adj_iu_ref[...]
    u_cur = user_ref[...]   # bf16 matmul operands
    i_cur = item_ref[...]

    # Layer-0 contribution accumulates directly in the (VMEM) output refs.
    u_out_ref[...] = u_cur.astype(jnp.float32)
    i_out_ref[...] = i_cur.astype(jnp.float32)

    # Statically unrolled propagation (n_layers is a compile-time constant).
    # Bipartite LightGCN step: users gather from items and vice versa.
    for _ in range(N_LAYERS):
        u_next = jnp.dot(adj_ui, i_cur, preferred_element_type=jnp.float32)
        i_next = jnp.dot(adj_iu, u_cur, preferred_element_type=jnp.float32)
        u_out_ref[...] += u_next
        i_out_ref[...] += i_next
        u_cur = u_next.astype(jnp.bfloat16)
        i_cur = i_next.astype(jnp.bfloat16)

    # Mean over (n_layers + 1) stacked embeddings, plus item residual
    # (re-read from item_ref; f32 elementwise math).
    scale = 1.0 / float(N_LAYERS + 1)
    u_out_ref[...] = u_out_ref[...] * scale
    i_out_ref[...] = i_out_ref[...] * scale + item_ref[...].astype(jnp.float32)


def bm3_forward(adj_ui, user_emb, item_emb):
    """adj_ui: [N_USERS, N_ITEMS] f32 user->item block of the SYMMETRICALLY
    normalized adjacency (D^-1/2 A D^-1/2); user_emb/item_emb: f32 embeddings."""
    # bf16 operands for the MXU; adjacency transpose hoisted out of the kernel.
    adj_ui_bf = adj_ui.astype(jnp.bfloat16)
    adj_iu_bf = adj_ui.T.astype(jnp.bfloat16)   # valid ONLY for symmetric norm
    user_bf = user_emb.astype(jnp.bfloat16)
    item_bf = item_emb.astype(jnp.bfloat16)

    out_shapes = (
        jax.ShapeDtypeStruct((N_USERS, EMBED_DIM), jnp.float32),
        jax.ShapeDtypeStruct((N_ITEMS, EMBED_DIM), jnp.float32),
    )
    flops = N_LAYERS * 2 * (2 * N_USERS * N_ITEMS * EMBED_DIM)
    bytes_accessed = (
        2 * (2 * N_USERS * N_ITEMS               # two bf16 adjacency blocks
             + N_USERS * EMBED_DIM               # bf16 user emb
             + N_ITEMS * EMBED_DIM)              # bf16 item emb
        + 4 * (N_USERS * EMBED_DIM + N_ITEMS * EMBED_DIM)  # f32 outputs
    )
    u, i = pl.pallas_call(
        bm3_forward_kernel,
        out_shape=out_shapes,
        in_specs=[
            pl.BlockSpec((N_USERS, N_ITEMS), lambda: (0, 0)),
            pl.BlockSpec((N_ITEMS, N_USERS), lambda: (0, 0)),
            pl.BlockSpec((N_USERS, EMBED_DIM), lambda: (0, 0)),
            pl.BlockSpec((N_ITEMS, EMBED_DIM), lambda: (0, 0)),
        ],
        out_specs=(
            pl.BlockSpec((N_USERS, EMBED_DIM), lambda: (0, 0)),
            pl.BlockSpec((N_ITEMS, EMBED_DIM), lambda: (0, 0)),
        ),
        cost_estimate=pl.CostEstimate(
            flops=flops, transcendentals=0, bytes_accessed=bytes_accessed),
    )(adj_ui_bf, adj_iu_bf, user_bf, item_bf)
    return u, i


def make_norm_adj(key):
    """Dense version of get_norm_adj_mat: D^-1/2 A D^-1/2 for a bipartite graph."""
    inter = (jax.random.uniform(key, (N_USERS, N_ITEMS)) < 0.05).astype(jnp.float32)
    A = jnp.zeros((N_NODES, N_NODES), dtype=jnp.float32)
    A = A.at[:N_USERS, N_USERS:].set(inter)
    A = A.at[N_USERS:, :N_USERS].set(inter.T)
    deg = (A > 0).sum(axis=1).astype(jnp.float32) + 1e-7
    d_inv_sqrt = deg ** -0.5
    return d_inv_sqrt[:, None] * A * d_inv_sqrt[None, :]


def xavier_uniform(key, shape):
    fan_in, fan_out = shape[0], shape[1]
    bound = (6.0 / (fan_in + fan_out)) ** 0.5
    return jax.random.uniform(key, shape, jnp.float32, -bound, bound)


if __name__ == "__main__":
    key = jax.random.PRNGKey(0)
    k_adj, k_user, k_item = jax.random.split(key, 3)

    norm_adj = make_norm_adj(k_adj)                              # [256, 256]
    user_emb = xavier_uniform(k_user, (N_USERS, EMBED_DIM))      # [128, 128]
    item_emb = xavier_uniform(k_item, (N_ITEMS, EMBED_DIM))      # [128, 128]

    # only the nonzero user->item block is fed to the kernel
    adj_ui = norm_adj[:N_USERS, N_USERS:]                        # [128, 128]

    u_g, i_g = bm3_forward(adj_ui, user_emb, item_emb)
    u_g, i_g = jax.block_until_ready((u_g, i_g))

    # pure-JAX f32 reference (full dense adjacency, original math).
    # Kernel uses bf16 matmul operands, so tolerance is relaxed vs the f32 ref.
    ego0 = jnp.concatenate([user_emb, item_emb], axis=0)
    layers = [ego0]
    e = ego0
    for _ in range(N_LAYERS):
        e = norm_adj @ e
        layers.append(e)
    mean_ref = jnp.stack(layers, axis=1).mean(axis=1)
    u_ref = mean_ref[:N_USERS]
    i_ref = mean_ref[N_USERS:] + item_emb

    assert u_g.shape == (N_USERS, EMBED_DIM) and i_g.shape == (N_ITEMS, EMBED_DIM)
    assert jnp.allclose(u_g, u_ref, atol=2e-2, rtol=2e-2)
    assert jnp.allclose(i_g, i_ref, atol=2e-2, rtol=2e-2)
    print("KERNEL_OK")
</pallas_src>

<mosaic_0001>
module attributes {stable_mosaic.version = 11 : i64} {
  func.func @bm3_forward_kernel(%arg0: memref<128x128xbf16, #tpu.memory_space<vmem>>, %arg1: memref<128x128xbf16, #tpu.memory_space<vmem>>, %arg2: memref<128x128xbf16, #tpu.memory_space<vmem>>, %arg3: memref<128x128xbf16, #tpu.memory_space<vmem>>, %arg4: memref<128x128xf32, #tpu.memory_space<vmem>>, %arg5: memref<128x128xf32, #tpu.memory_space<vmem>>) attributes {dimension_semantics = [], scalar_prefetch = 0 : i64, scratch_operands = 0 : i64, tpu.core_type = #tpu.core_type<tc>} {
    %c0 = arith.constant 0 : index
    %c0_0 = arith.constant 0 : index
    %0 = vector.load %arg0[%c0, %c0_0] : memref<128x128xbf16, #tpu.memory_space<vmem>>, vector<128x128xbf16>
    %c0_1 = arith.constant 0 : index
    %c0_2 = arith.constant 0 : index
    %1 = vector.load %arg1[%c0_1, %c0_2] : memref<128x128xbf16, #tpu.memory_space<vmem>>, vector<128x128xbf16>
    %c0_3 = arith.constant 0 : index
    %c0_4 = arith.constant 0 : index
    %2 = vector.load %arg2[%c0_3, %c0_4] : memref<128x128xbf16, #tpu.memory_space<vmem>>, vector<128x128xbf16>
    %c0_5 = arith.constant 0 : index
    %c0_6 = arith.constant 0 : index
    %3 = vector.load %arg3[%c0_5, %c0_6] : memref<128x128xbf16, #tpu.memory_space<vmem>>, vector<128x128xbf16>
    %4 = arith.extf %2 : vector<128x128xbf16> to vector<128x128xf32>
    %c0_7 = arith.constant 0 : index
    %c0_8 = arith.constant 0 : index
    %5 = vector.load %arg4[%c0_7, %c0_8] : memref<128x128xf32, #tpu.memory_space<vmem>>, vector<128x128xf32>
    tpu.vector_store %arg4[%c0_7, %c0_8], %4 {strides = array<i32>} : memref<128x128xf32, #tpu.memory_space<vmem>>, vector<128x128xf32>,
    %6 = arith.extf %3 : vector<128x128xbf16> to vector<128x128xf32>
    %c0_9 = arith.constant 0 : index
    %c0_10 = arith.constant 0 : index
    %7 = vector.load %arg5[%c0_9, %c0_10] : memref<128x128xf32, #tpu.memory_space<vmem>>, vector<128x128xf32>
    tpu.vector_store %arg5[%c0_9, %c0_10], %6 {strides = array<i32>} : memref<128x128xf32, #tpu.memory_space<vmem>>, vector<128x128xf32>,
    %cst = arith.constant dense<0.000000e+00> : vector<128x128xf32>
    %8 = tpu.matmul %0, %3, %cst {dimension_numbers = #tpu.dot_dimension_numbers<[1], [0], [0], [1], [0, 0, 1, 1], [], []>} : vector<128x128xbf16>, vector<128x128xbf16>, vector<128x128xf32> -> vector<128x128xf32>
    %cst_11 = arith.constant dense<0.000000e+00> : vector<128x128xf32>
    %9 = tpu.matmul %1, %2, %cst_11 {dimension_numbers = #tpu.dot_dimension_numbers<[1], [0], [0], [1], [0, 0, 1, 1], [], []>} : vector<128x128xbf16>, vector<128x128xbf16>, vector<128x128xf32> -> vector<128x128xf32>
    %c0_12 = arith.constant 0 : index
    %c0_13 = arith.constant 0 : index
    %10 = vector.load %arg4[%c0_12, %c0_13] : memref<128x128xf32, #tpu.memory_space<vmem>>, vector<128x128xf32>
    %11 = arith.addf %10, %8 : vector<128x128xf32>
    %c0_14 = arith.constant 0 : index
    %c0_15 = arith.constant 0 : index
    %12 = vector.load %arg4[%c0_14, %c0_15] : memref<128x128xf32, #tpu.memory_space<vmem>>, vector<128x128xf32>
    tpu.vector_store %arg4[%c0_14, %c0_15], %11 {strides = array<i32>} : memref<128x128xf32, #tpu.memory_space<vmem>>, vector<128x128xf32>,
    %c0_16 = arith.constant 0 : index
    %c0_17 = arith.constant 0 : index
    %13 = vector.load %arg5[%c0_16, %c0_17] : memref<128x128xf32, #tpu.memory_space<vmem>>, vector<128x128xf32>
    %14 = arith.addf %13, %9 : vector<128x128xf32>
    %c0_18 = arith.constant 0 : index
    %c0_19 = arith.constant 0 : index
    %15 = vector.load %arg5[%c0_18, %c0_19] : memref<128x128xf32, #tpu.memory_space<vmem>>, vector<128x128xf32>
    tpu.vector_store %arg5[%c0_18, %c0_19], %14 {strides = array<i32>} : memref<128x128xf32, #tpu.memory_space<vmem>>, vector<128x128xf32>,
    %c0_20 = arith.constant 0 : index
    %c0_21 = arith.constant 0 : index
    %16 = vector.load %arg4[%c0_20, %c0_21] : memref<128x128xf32, #tpu.memory_space<vmem>>, vector<128x128xf32>
    %cst_22 = arith.constant 5.000000e-01 : f32
    %17 = vector.broadcast %cst_22 : f32 to vector<128x128xf32>
    %18 = arith.mulf %16, %17 : vector<128x128xf32>
    %c0_23 = arith.constant 0 : index
    %c0_24 = arith.constant 0 : index
    %19 = vector.load %arg4[%c0_23, %c0_24] : memref<128x128xf32, #tpu.memory_space<vmem>>, vector<128x128xf32>
    tpu.vector_store %arg4[%c0_23, %c0_24], %18 {strides = array<i32>} : memref<128x128xf32, #tpu.memory_space<vmem>>, vector<128x128xf32>,
    %c0_25 = arith.constant 0 : index
    %c0_26 = arith.constant 0 : index
    %20 = vector.load %arg5[%c0_25, %c0_26] : memref<128x128xf32, #tpu.memory_space<vmem>>, vector<128x128xf32>
    %cst_27 = arith.constant 5.000000e-01 : f32
    %21 = vector.broadcast %cst_27 : f32 to vector<128x128xf32>
    %22 = arith.mulf %20, %21 : vector<128x128xf32>
    %c0_28 = arith.constant 0 : index
    %c0_29 = arith.constant 0 : index
    %23 = vector.load %arg3[%c0_28, %c0_29] : memref<128x128xbf16, #tpu.memory_space<vmem>>, vector<128x128xbf16>
    %24 = arith.extf %23 : vector<128x128xbf16> to vector<128x128xf32>
    %25 = arith.addf %22, %24 : vector<128x128xf32>
    %c0_30 = arith.constant 0 : index
    %c0_31 = arith.constant 0 : index
    %26 = vector.load %arg5[%c0_30, %c0_31] : memref<128x128xf32, #tpu.memory_space<vmem>>, vector<128x128xf32>
    tpu.vector_store %arg5[%c0_30, %c0_31], %25 {strides = array<i32>} : memref<128x128xf32, #tpu.memory_space<vmem>>, vector<128x128xf32>,
    return
  }
}

</mosaic_0001>

<llo_original>
// kernel: tpu_custom_call.1
$region0: #{tpu_custom_call.1}
  #allocation0 [shape = 'u32[]', space=smem, size = 0x4, offset = 0x4, fixed_abs, tag = 'smem constant byte address 0x4 - core index']
  #allocation1 [shape = 'u32[144,128]{1,0:T(1,128)}', space=vmem, size = 0x12000, scoped, tag = 'internal scratch']
  %s0 = inlined_call_operand.hbm [shape: bf16[128,128], index: 0, kind: input, shape index: {}]
  %s1 = inlined_call_operand.hbm [shape: bf16[128,128], index: 1, kind: input, shape index: {}]
  %s2 = inlined_call_operand.hbm [shape: bf16[128,128], index: 2, kind: input, shape index: {}]
  %s3 = inlined_call_operand.hbm [shape: bf16[128,128], index: 3, kind: input, shape index: {}]
  %s4 = inlined_call_operand.hbm [shape: f32[128,128], index: 4, kind: output, shape index: {0}]
  %s5 = inlined_call_operand.hbm [shape: f32[128,128], index: 5, kind: output, shape index: {1}]
  %6 = xla_tuple %s4, %s5
  %s7 = sld [smem:[#allocation0]]
  $region50: #{tpu_custom_call.1} parent=0
    _
  %s9 = ssub.s32 1, %s7
  %s10 = scalar_select 0, %s9, %s7
  $region1: #{tpu_custom_call.1} parent=0
    #allocation2 [shape = 'u8[32768]{0}', space=vmem, size = 0x8000, scoped, tag = 'input window, operand 0, single buffered']
    #allocation3 [shape = 's32[1]{0}', space=sflag, size = 0x4, scoped, tag = 'scoped memory for tpu_custom_call.1']
    #allocation4 [shape = 's32[1]{0}', space=sflag, size = 0x4, scoped, tag = 'scoped memory for tpu_custom_call.1']
    #allocation5 [shape = 'u8[32768]{0}', space=vmem, size = 0x8000, scoped, tag = 'input window, operand 1, single buffered']
    #allocation6 [shape = 's32[1]{0}', space=sflag, size = 0x4, scoped, tag = 'scoped memory for tpu_custom_call.1']
    #allocation7 [shape = 'u8[32768]{0}', space=vmem, size = 0x8000, scoped, tag = 'input window, operand 2, single buffered']
    #allocation8 [shape = 'u8[32768]{0}', space=vmem, size = 0x8000, scoped, tag = 'input window, operand 3, single buffered']
    #allocation9 [shape = 's32[1]{0}', space=sflag, size = 0x4, scoped, tag = 'scoped memory for tpu_custom_call.1']
    #allocation10 [shape = 'u8[65536]{0}', space=vmem, size = 0x10000, scoped, tag = 'output window, operand 0, single buffered']
    #allocation11 [shape = 'u8[65536]{0}', space=vmem, size = 0x10000, scoped, tag = 'output window, operand 1, single buffered']
    #allocation12 [shape = 's32[1]{0}', space=sflag, size = 0x4, scoped, tag = 'scoped memory for tpu_custom_call.1']
    %11 = vsyncpa [#allocation3], 0
    %12 = vsyncpa [#allocation6], 0
    %13 = vsyncpa [#allocation9], 0
    %14 = vsyncpa [#allocation4], 0
    %15 = vsyncpa [#allocation12], 0
    // Predicated region
    $region2: #{tpu_custom_call.1} parent=1 // pred_check
      _
    $region3: #{tpu_custom_call.1} parent=1 // pred_check_branch
      %17 = sbr.rel (0) target = $region5
    $region4: #{tpu_custom_call.1} parent=1 // pred_region
      %s19 = ssub.s32 1024, 1024
      %20 = vsyncadd [#allocation3], %s19
      %s21 = sshll.u32 [#allocation2], 4
      %s22 = int_to_ptr.vmem [resolvable:$true] %s21
      %27 = dma.hbm_to_vmem [thread:$0]  %s0, 1024, %s22, [#allocation3], 64, 64, 4
    $region5: #{tpu_custom_call.1} parent=1 // pred_fallthru
      _
    // Predicated region
    $region6: #{tpu_custom_call.1} parent=1 // pred_check
      _
    $region7: #{tpu_custom_call.1} parent=1 // pred_check_branch
      %29 = sbr.rel (0) target = $region9
    $region8: #{tpu_custom_call.1} parent=1 // pred_region
      %s31 = ssub.s32 1024, 1024
      %32 = vsyncadd [#allocation6], %s31
      %s33 = sshll.u32 [#allocation5], 4
      %s34 = int_to_ptr.vmem [resolvable:$true] %s33
      %39 = dma.hbm_to_vmem [thread:$0]  %s1, 1024, %s34, [#allocation6], 64, 64, 4
    $region9: #{tpu_custom_call.1} parent=1 // pred_fallthru
      _
    // Predicated region
    $region10: #{tpu_custom_call.1} parent=1 // pred_check
      _
    $region11: #{tpu_custom_call.1} parent=1 // pred_check_branch
      %41 = sbr.rel (0) target = $region13
    $region12: #{tpu_custom_call.1} parent=1 // pred_region
      %s43 = ssub.s32 1024, 1024
      %44 = vsyncadd [#allocation6], %s43
      %s45 = sshll.u32 [#allocation7], 4
      %s46 = int_to_ptr.vmem [resolvable:$true] %s45
      %51 = dma.hbm_to_vmem [thread:$0]  %s2, 1024, %s46, [#allocation6], 64, 64, 4
    $region13: #{tpu_custom_call.1} parent=1 // pred_fallthru
      _
    // Predicated region
    $region14: #{tpu_custom_call.1} parent=1 // pred_check
      _
    $region15: #{tpu_custom_call.1} parent=1 // pred_check_branch
      %53 = sbr.rel (0) target = $region17
    $region16: #{tpu_custom_call.1} parent=1 // pred_region
      %s55 = ssub.s32 1024, 1024
      %56 = vsyncadd [#allocation9], %s55
      %s57 = sshll.u32 [#allocation8], 4
      %s58 = int_to_ptr.vmem [resolvable:$true] %s57
      %63 = dma.hbm_to_vmem [thread:$0]  %s3, 1024, %s58, [#allocation9], 64, 64, 4
    $region17: #{tpu_custom_call.1} parent=1 // pred_fallthru
      _
    // Predicated region
    $region18: #{tpu_custom_call.1} parent=1 // pred_check
      _
    $region19: #{tpu_custom_call.1} parent=1 // pred_check_branch
      %65 = sbr.rel (0) target = $region21
    $region20: #{tpu_custom_call.1} parent=1 // pred_region
      %66 = dma.done [#allocation3], 1024
    $region21: #{tpu_custom_call.1} parent=1 // pred_fallthru
      _
    // Predicated region
    $region22: #{tpu_custom_call.1} parent=1 // pred_check
      _
    $region23: #{tpu_custom_call.1} parent=1 // pred_check_branch
      %68 = sbr.rel (0) target = $region25
    $region24: #{tpu_custom_call.1} parent=1 // pred_region
      %69 = dma.done [#allocation6], 1024
    $region25: #{tpu_custom_call.1} parent=1 // pred_fallthru
      _
    // Predicated region
    $region26: #{tpu_custom_call.1} parent=1 // pred_check
      _
    $region27: #{tpu_custom_call.1} parent=1 // pred_check_branch
      %71 = sbr.rel (0) target = $region29
    $region28: #{tpu_custom_call.1} parent=1 // pred_region
      %72 = dma.done [#allocation6], 1024
    $region29: #{tpu_custom_call.1} parent=1 // pred_fallthru
      _
    // Predicated region
    $region30: #{tpu_custom_call.1} parent=1 // pred_check
      _
    $region31: #{tpu_custom_call.1} parent=1 // pred_check_branch
      %74 = sbr.rel (0) target = $region33
    $region32: #{tpu_custom_call.1} parent=1 // pred_region
      %75 = dma.done [#allocation9], 1024
    $region33: #{tpu_custom_call.1} parent=1 // pred_fallthru
      _
    %v77 = vld [vmem:[#allocation2] sm:$0xf]
    %v78 = vld [vmem:[#allocation2 + $0x4] sm:$0xf]
    %v79 = vld [vmem:[#allocation2 + $0x8] sm:$0xf]
    %v80 = vld [vmem:[#allocation2 + $0xc] sm:$0xf]
    %v81 = vld [vmem:[#allocation2 + $0x10] sm:$0xf]
    %v82 = vld [vmem:[#allocation2 + $0x14] sm:$0xf]
    %v83 = vld [vmem:[#allocation2 + $0x18] sm:$0xf]
    %v84 = vld [vmem:[#allocation2 + $0x1c] sm:$0xf]
    %v85 = vld [vmem:[#allocation2 + $0x20] sm:$0xf]
    %v86 = vld [vmem:[#allocation2 + $0x24] sm:$0xf]
    %v87 = vld [vmem:[#allocation2 + $0x28] sm:$0xf]
    %v88 = vld [vmem:[#allocation2 + $0x2c] sm:$0xf]
    %v89 = vld [vmem:[#allocation2 + $0x30] sm:$0xf]
    %v90 = vld [vmem:[#allocation2 + $0x34] sm:$0xf]
    %v91 = vld [vmem:[#allocation2 + $0x38] sm:$0xf]
    %v92 = vld [vmem:[#allocation2 + $0x3c] sm:$0xf]
    %v93 = vld [vmem:[#allocation5] sm:$0xf]
    %v94 = vld [vmem:[#allocation5 + $0x4] sm:$0xf]
    %v95 = vld [vmem:[#allocation5 + $0x8] sm:$0xf]
    %v96 = vld [vmem:[#allocation5 + $0xc] sm:$0xf]
    %v97 = vld [vmem:[#allocation5 + $0x10] sm:$0xf]
    %v98 = vld [vmem:[#allocation5 + $0x14] sm:$0xf]
    %v99 = vld [vmem:[#allocation5 + $0x18] sm:$0xf]
    %v100 = vld [vmem:[#allocation5 + $0x1c] sm:$0xf]
    %v101 = vld [vmem:[#allocation5 + $0x20] sm:$0xf]
    %v102 = vld [vmem:[#allocation5 + $0x24] sm:$0xf]
    %v103 = vld [vmem:[#allocation5 + $0x28] sm:$0xf]
    %v104 = vld [vmem:[#allocation5 + $0x2c] sm:$0xf]
    %v105 = vld [vmem:[#allocation5 + $0x30] sm:$0xf]
    %v106 = vld [vmem:[#allocation5 + $0x34] sm:$0xf]
    %v107 = vld [vmem:[#allocation5 + $0x38] sm:$0xf]
    %v108 = vld [vmem:[#allocation5 + $0x3c] sm:$0xf]
    %v109 = vld [vmem:[#allocation7] sm:$0xf]
    %v110 = vld [vmem:[#allocation7 + $0x4] sm:$0xf]
    %v111 = vld [vmem:[#allocation7 + $0x8] sm:$0xf]
    %v112 = vld [vmem:[#allocation7 + $0xc] sm:$0xf]
    %v113 = vld [vmem:[#allocation7 + $0x10] sm:$0xf]
    %v114 = vld [vmem:[#allocation7 + $0x14] sm:$0xf]
    %v115 = vld [vmem:[#allocation7 + $0x18] sm:$0xf]
    %v116 = vld [vmem:[#allocation7 + $0x1c] sm:$0xf]
    %v117 = vld [vmem:[#allocation7 + $0x20] sm:$0xf]
    %v118 = vld [vmem:[#allocation7 + $0x24] sm:$0xf]
    %v119 = vld [vmem:[#allocation7 + $0x28] sm:$0xf]
    %v120 = vld [vmem:[#allocation7 + $0x2c] sm:$0xf]
    %v121 = vld [vmem:[#allocation7 + $0x30] sm:$0xf]
    %v122 = vld [vmem:[#allocation7 + $0x34] sm:$0xf]
    %v123 = vld [vmem:[#allocation7 + $0x38] sm:$0xf]
    %v124 = vld [vmem:[#allocation7 + $0x3c] sm:$0xf]
    %v125 = vld [vmem:[#allocation8] sm:$0xf]
    %v126 = vld [vmem:[#allocation8 + $0x4] sm:$0xf]
    %v127 = vld [vmem:[#allocation8 + $0x8] sm:$0xf]
    %v128 = vld [vmem:[#allocation8 + $0xc] sm:$0xf]
    %v129 = vld [vmem:[#allocation8 + $0x10] sm:$0xf]
    %v130 = vld [vmem:[#allocation8 + $0x14] sm:$0xf]
    %v131 = vld [vmem:[#allocation8 + $0x18] sm:$0xf]
    %v132 = vld [vmem:[#allocation8 + $0x1c] sm:$0xf]
    %v133 = vld [vmem:[#allocation8 + $0x20] sm:$0xf]
    %v134 = vld [vmem:[#allocation8 + $0x24] sm:$0xf]
    %v135 = vld [vmem:[#allocation8 + $0x28] sm:$0xf]
    %v136 = vld [vmem:[#allocation8 + $0x2c] sm:$0xf]
    %v137 = vld [vmem:[#allocation8 + $0x30] sm:$0xf]
    %v138 = vld [vmem:[#allocation8 + $0x34] sm:$0xf]
    %v139 = vld [vmem:[#allocation8 + $0x38] sm:$0xf]
    %v140 = vld [vmem:[#allocation8 + $0x3c] sm:$0xf]
    %v141 = vunpack.c.l.bf16 %v109
    %v142 = vunpack.c.l.bf16 %v110
    %v143 = vunpack.c.l.bf16 %v111
    %v144 = vunpack.c.l.bf16 %v112
    %v145 = vunpack.c.l.bf16 %v113
    %v146 = vunpack.c.l.bf16 %v114
    %v147 = vunpack.c.l.bf16 %v115
    %v148 = vunpack.c.l.bf16 %v116
    %v149 = vunpack.c.l.bf16 %v117
    %v150 = vunpack.c.l.bf16 %v118
    %v151 = vunpack.c.l.bf16 %v119
    %v152 = vunpack.c.l.bf16 %v120
    %v153 = vunpack.c.l.bf16 %v121
    %v154 = vunpack.c.l.bf16 %v122
    %v155 = vunpack.c.l.bf16 %v123
    %v156 = vunpack.c.l.bf16 %v124
    %157 = vst [vmem:[#allocation10] sm:$0xff] %v141
    %158 = vst [vmem:[#allocation10 + $0x8] sm:$0xff] %v142
    %159 = vst [vmem:[#allocation10 + $0x10] sm:$0xff] %v143
    %160 = vst [vmem:[#allocation10 + $0x18] sm:$0xff] %v144
    %161 = vst [vmem:[#allocation10 + $0x20] sm:$0xff] %v145
    %162 = vst [vmem:[#allocation10 + $0x28] sm:$0xff] %v146
    %163 = vst [vmem:[#allocation10 + $0x30] sm:$0xff] %v147
    %164 = vst [vmem:[#allocation10 + $0x38] sm:$0xff] %v148
    %165 = vst [vmem:[#allocation10 + $0x40] sm:$0xff] %v149
    %166 = vst [vmem:[#allocation10 + $0x48] sm:$0xff] %v150
    %167 = vst [vmem:[#allocation10 + $0x50] sm:$0xff] %v151
    %168 = vst [vmem:[#allocation10 + $0x58] sm:$0xff] %v152
    %169 = vst [vmem:[#allocation10 + $0x60] sm:$0xff] %v153
    %170 = vst [vmem:[#allocation10 + $0x68] sm:$0xff] %v154
    %171 = vst [vmem:[#allocation10 + $0x70] sm:$0xff] %v155
    %172 = vst [vmem:[#allocation10 + $0x78] sm:$0xff] %v156
    %v173 = vunpack.c.l.bf16 %v125
    %v174 = vunpack.c.l.bf16 %v126
    %v175 = vunpack.c.l.bf16 %v127
    %v176 = vunpack.c.l.bf16 %v128
    %v177 = vunpack.c.l.bf16 %v129
    %v178 = vunpack.c.l.bf16 %v130
    %v179 = vunpack.c.l.bf16 %v131
    %v180 = vunpack.c.l.bf16 %v132
    %v181 = vunpack.c.l.bf16 %v133
    %v182 = vunpack.c.l.bf16 %v134
    %v183 = vunpack.c.l.bf16 %v135
    %v184 = vunpack.c.l.bf16 %v136
    %v185 = vunpack.c.l.bf16 %v137
    %v186 = vunpack.c.l.bf16 %v138
    %v187 = vunpack.c.l.bf16 %v139
    %v188 = vunpack.c.l.bf16 %v140
    %189 = vst [vmem:[#allocation11] sm:$0xff] %v173
    %190 = vst [vmem:[#allocation11 + $0x8] sm:$0xff] %v174
    %191 = vst [vmem:[#allocation11 + $0x10] sm:$0xff] %v175
    %192 = vst [vmem:[#allocation11 + $0x18] sm:$0xff] %v176
    %193 = vst [vmem:[#allocation11 + $0x20] sm:$0xff] %v177
    %194 = vst [vmem:[#allocation11 + $0x28] sm:$0xff] %v178
    %195 = vst [vmem:[#allocation11 + $0x30] sm:$0xff] %v179
    %196 = vst [vmem:[#allocation11 + $0x38] sm:$0xff] %v180
    %197 = vst [vmem:[#allocation11 + $0x40] sm:$0xff] %v181
    %198 = vst [vmem:[#allocation11 + $0x48] sm:$0xff] %v182
    %199 = vst [vmem:[#allocation11 + $0x50] sm:$0xff] %v183
    %200 = vst [vmem:[#allocation11 + $0x58] sm:$0xff] %v184
    %201 = vst [vmem:[#allocation11 + $0x60] sm:$0xff] %v185
    %202 = vst [vmem:[#allocation11 + $0x68] sm:$0xff] %v186
    %203 = vst [vmem:[#allocation11 + $0x70] sm:$0xff] %v187
    %204 = vst [vmem:[#allocation11 + $0x78] sm:$0xff] %v188
    %v221 = vunpack.c.l.b16 %v77
    %v222 = vunpack.c.l.b16 %v78
    %v223 = vunpack.c.l.b16 %v79
    %v224 = vunpack.c.l.b16 %v80
    %v225 = vunpack.c.l.b16 %v81
    %v226 = vunpack.c.l.b16 %v82
    %v227 = vunpack.c.l.b16 %v83
    %v228 = vunpack.c.l.b16 %v84
    %v229 = vunpack.c.l.b16 %v85
    %v230 = vunpack.c.l.b16 %v86
    %v231 = vunpack.c.l.b16 %v87
    %v232 = vunpack.c.l.b16 %v88
    %v233 = vunpack.c.l.b16 %v89
    %v234 = vunpack.c.l.b16 %v90
    %v235 = vunpack.c.l.b16 %v91
    %v236 = vunpack.c.l.b16 %v92
    %v237 = vpack.c.b16 %v222, %v221
    %v238 = vpack.c.b16 %v224, %v223
    %v239 = vpack.c.b16 %v226, %v225
    %v240 = vpack.c.b16 %v228, %v227
    %v241 = vpack.c.b16 %v230, %v229
    %v242 = vpack.c.b16 %v232, %v231
    %v243 = vpack.c.b16 %v234, %v233
    %v244 = vpack.c.b16 %v236, %v235
    %v269 = vunpack.c.l.b16 %v125
    %v270 = vunpack.c.l.b16 %v126
    %v271 = vunpack.c.l.b16 %v127
    %v272 = vunpack.c.l.b16 %v128
    %v273 = vunpack.c.l.b16 %v129
    %v274 = vunpack.c.l.b16 %v130
    %v275 = vunpack.c.l.b16 %v131
    %v276 = vunpack.c.l.b16 %v132
    %v277 = vunpack.c.l.b16 %v133
    %v278 = vunpack.c.l.b16 %v134
    %v279 = vunpack.c.l.b16 %v135
    %v280 = vunpack.c.l.b16 %v136
    %v281 = vunpack.c.l.b16 %v137
    %v282 = vunpack.c.l.b16 %v138
    %v283 = vunpack.c.l.b16 %v139
    %v284 = vunpack.c.l.b16 %v140
    %v285 = vpack.c.b16 %v270, %v269
    %v286 = vpack.c.b16 %v272, %v271
    %v287 = vpack.c.b16 %v274, %v273
    %v288 = vpack.c.b16 %v276, %v275
    %v289 = vpack.c.b16 %v278, %v277
    %v290 = vpack.c.b16 %v280, %v279
    %v291 = vpack.c.b16 %v282, %v281
    %v292 = vpack.c.b16 %v284, %v283
    %301 = vmatprep.subr.bf16.mxu0 0
    %302 = vmatpush1.bf16.msra.mxu0 %v292
    %303 = vmatprep.subr.bf16.mxu0 0
    %304 = vmatpush1.bf16.msra.mxu0 %v291
    %305 = vmatprep.subr.bf16.mxu0 0
    %306 = vmatpush1.bf16.msra.mxu0 %v290
    %307 = vmatprep.subr.bf16.mxu0 0
    %308 = vmatpush1.bf16.msra.mxu0 %v289
    %309 = vmatprep.subr.bf16.mxu0 0
    %310 = vmatpush1.bf16.msra.mxu0 %v288
    %311 = vmatprep.subr.bf16.mxu0 0
    %312 = vmatpush1.bf16.msra.mxu0 %v287
    %313 = vmatprep.subr.bf16.mxu0 0
    %314 = vmatpush1.bf16.msra.mxu0 %v286
    %315 = vmatprep.subr.bf16.mxu0 0
    %316 = vmatpush1.bf16.msra.mxu0 %v285
    %317 = vmatprep.subr.bf16.mxu0 0
    %318 = vmatpush2.bf16.msra.mxu0 0
    %319 = vmatprep.subr.bf16.mxu0 0
    %320 = vmatpush2.bf16.msra.mxu0 0
    %321 = vmatprep.subr.bf16.mxu0 0
    %322 = vmatpush2.bf16.msra.mxu0 0
    %323 = vmatprep.subr.bf16.mxu0 0
    %324 = vmatpush2.bf16.msra.mxu0 0
    %325 = vmatprep.subr.bf16.mxu0 0
    %326 = vmatpush2.bf16.msra.mxu0 0
    %327 = vmatprep.subr.bf16.mxu0 0
    %328 = vmatpush2.bf16.msra.mxu0 0
    %329 = vmatprep.subr.bf16.mxu0 0
    %330 = vmatpush2.bf16.msra.mxu0 0
    %331 = vmatprep.subr.bf16.mxu0 0
    %332 = vmatpush2.bf16.msra.mxu0 0
    %333 = vmatprep.mubr.bf16.mxu0 0
    %334 = vmatmul.mubr.bf16.gmra.mxu0 %v237
    %v335 = vpop.f32.mrf.mxu0
    %v336 = vadd.f32 0.0, %v335
    %v337 = vpop.f32.mrf.mxu0
    %v338 = vpop.f32.mrf.mxu0
    %v339 = vadd.f32 0.0, %v338
    %v340 = vpop.f32.mrf.mxu0
    %341 = vmatprep.mubr.bf16.mxu0 0
    %342 = vmatmul.mubr.bf16.gmra.mxu0 %v238
    %v343 = vpop.f32.mrf.mxu0
    %v344 = vadd.f32 0.0, %v343
    %v345 = vpop.f32.mrf.mxu0
    %v346 = vpop.f32.mrf.mxu0
    %v347 = vadd.f32 0.0, %v346
    %v348 = vpop.f32.mrf.mxu0
    %349 = vmatprep.mubr.bf16.mxu0 0
    %350 = vmatmul.mubr.bf16.gmra.mxu0 %v239
    %v351 = vpop.f32.mrf.mxu0
    %v352 = vadd.f32 0.0, %v351
    %v353 = vpop.f32.mrf.mxu0
    %v354 = vpop.f32.mrf.mxu0
    %v355 = vadd.f32 0.0, %v354
    %v356 = vpop.f32.mrf.mxu0
    %357 = vmatprep.mubr.bf16.mxu0 0
    %358 = vmatmul.mubr.bf16.gmra.mxu0 %v240
    %v359 = vpop.f32.mrf.mxu0
    %v360 = vadd.f32 0.0, %v359
    %v361 = vpop.f32.mrf.mxu0
    %v362 = vpop.f32.mrf.mxu0
    %v363 = vadd.f32 0.0, %v362
    %v364 = vpop.f32.mrf.mxu0
    %365 = vmatprep.mubr.bf16.mxu0 0
    %366 = vmatmul.mubr.bf16.gmra.mxu0 %v241
    %v367 = vpop.f32.mrf.mxu0
    %v368 = vadd.f32 0.0, %v367
    %v369 = vpop.f32.mrf.mxu0
    %v370 = vpop.f32.mrf.mxu0
    %v371 = vadd.f32 0.0, %v370
    %v372 = vpop.f32.mrf.mxu0
    %373 = vmatprep.mubr.bf16.mxu0 0
    %374 = vmatmul.mubr.bf16.gmra.mxu0 %v242
    %v375 = vpop.f32.mrf.mxu0
    %v376 = vadd.f32 0.0, %v375
    %v377 = vpop.f32.mrf.mxu0
    %v378 = vpop.f32.mrf.mxu0
    %v379 = vadd.f32 0.0, %v378
    %v380 = vpop.f32.mrf.mxu0
    %381 = vmatprep.mubr.bf16.mxu0 0
    %382 = vmatmul.mubr.bf16.gmra.mxu0 %v243
    %v383 = vpop.f32.mrf.mxu0
    %v384 = vadd.f32 0.0, %v383
    %v385 = vpop.f32.mrf.mxu0
    %v386 = vpop.f32.mrf.mxu0
    %v387 = vadd.f32 0.0, %v386
    %v388 = vpop.f32.mrf.mxu0
    %389 = vmatprep.mubr.bf16.mxu0 0
    %390 = vmatmul.mubr.bf16.gmra.mxu0 %v244
    %v391 = vpop.f32.mrf.mxu0
    %v392 = vadd.f32 0.0, %v391
    %v393 = vpop.f32.mrf.mxu0
    %v394 = vpop.f32.mrf.mxu0
    %v395 = vadd.f32 0.0, %v394
    %v396 = vpop.f32.mrf.mxu0
    %397 = vdwg.mxu0
    %v414 = vunpack.c.l.b16 %v93
    %v415 = vunpack.c.l.b16 %v94
    %v416 = vunpack.c.l.b16 %v95
    %v417 = vunpack.c.l.b16 %v96
    %v418 = vunpack.c.l.b16 %v97
    %v419 = vunpack.c.l.b16 %v98
    %v420 = vunpack.c.l.b16 %v99
    %v421 = vunpack.c.l.b16 %v100
    %v422 = vunpack.c.l.b16 %v101
    %v423 = vunpack.c.l.b16 %v102
    %v424 = vunpack.c.l.b16 %v103
    %v425 = vunpack.c.l.b16 %v104
    %v426 = vunpack.c.l.b16 %v105
    %v427 = vunpack.c.l.b16 %v106
    %v428 = vunpack.c.l.b16 %v107
    %v429 = vunpack.c.l.b16 %v108
    %v430 = vpack.c.b16 %v415, %v414
    %v431 = vpack.c.b16 %v417, %v416
    %v432 = vpack.c.b16 %v419, %v418
    %v433 = vpack.c.b16 %v421, %v420
    %v434 = vpack.c.b16 %v423, %v422
    %v435 = vpack.c.b16 %v425, %v424
    %v436 = vpack.c.b16 %v427, %v426
    %v437 = vpack.c.b16 %v429, %v428
    %v462 = vunpack.c.l.b16 %v109
    %v463 = vunpack.c.l.b16 %v110
    %v464 = vunpack.c.l.b16 %v111
    %v465 = vunpack.c.l.b16 %v112
    %v466 = vunpack.c.l.b16 %v113
    %v467 = vunpack.c.l.b16 %v114
    %v468 = vunpack.c.l.b16 %v115
    %v469 = vunpack.c.l.b16 %v116
    %v470 = vunpack.c.l.b16 %v117
    %v471 = vunpack.c.l.b16 %v118
    %v472 = vunpack.c.l.b16 %v119
    %v473 = vunpack.c.l.b16 %v120
    %v474 = vunpack.c.l.b16 %v121
    %v475 = vunpack.c.l.b16 %v122
    %v476 = vunpack.c.l.b16 %v123
    %v477 = vunpack.c.l.b16 %v124
    %v478 = vpack.c.b16 %v463, %v462
    %v479 = vpack.c.b16 %v465, %v464
    %v480 = vpack.c.b16 %v467, %v466
    %v481 = vpack.c.b16 %v469, %v468
    %v482 = vpack.c.b16 %v471, %v470
    %v483 = vpack.c.b16 %v473, %v472
    %v484 = vpack.c.b16 %v475, %v474
    %v485 = vpack.c.b16 %v477, %v476
    %494 = vmatprep.subr.bf16.mxu0 0
    %495 = vmatpush1.bf16.msra.mxu0 %v485
    %496 = vmatprep.subr.bf16.mxu0 0
    %497 = vmatpush1.bf16.msra.mxu0 %v484
    %498 = vmatprep.subr.bf16.mxu0 0
    %499 = vmatpush1.bf16.msra.mxu0 %v483
    %500 = vmatprep.subr.bf16.mxu0 0
    %501 = vmatpush1.bf16.msra.mxu0 %v482
    %502 = vmatprep.subr.bf16.mxu0 0
    %503 = vmatpush1.bf16.msra.mxu0 %v481
    %504 = vmatprep.subr.bf16.mxu0 0
    %505 = vmatpush1.bf16.msra.mxu0 %v480
    %506 = vmatprep.subr.bf16.mxu0 0
    %507 = vmatpush1.bf16.msra.mxu0 %v479
    %508 = vmatprep.subr.bf16.mxu0 0
    %509 = vmatpush1.bf16.msra.mxu0 %v478
    %510 = vmatprep.subr.bf16.mxu0 0
    %511 = vmatpush2.bf16.msra.mxu0 0
    %512 = vmatprep.subr.bf16.mxu0 0
    %513 = vmatpush2.bf16.msra.mxu0 0
    %514 = vmatprep.subr.bf16.mxu0 0
    %515 = vmatpush2.bf16.msra.mxu0 0
    %516 = vmatprep.subr.bf16.mxu0 0
    %517 = vmatpush2.bf16.msra.mxu0 0
    %518 = vmatprep.subr.bf16.mxu0 0
    %519 = vmatpush2.bf16.msra.mxu0 0
    %520 = vmatprep.subr.bf16.mxu0 0
    %521 = vmatpush2.bf16.msra.mxu0 0
    %522 = vmatprep.subr.bf16.mxu0 0
    %523 = vmatpush2.bf16.msra.mxu0 0
    %524 = vmatprep.subr.bf16.mxu0 0
    %525 = vmatpush2.bf16.msra.mxu0 0
    %526 = vmatprep.mubr.bf16.mxu0 0
    %527 = vmatmul.mubr.bf16.gmra.mxu0 %v430
    %v528 = vpop.f32.mrf.mxu0
    %v529 = vadd.f32 0.0, %v528
    %v530 = vpop.f32.mrf.mxu0
    %v531 = vpop.f32.mrf.mxu0
    %v532 = vadd.f32 0.0, %v531
    %v533 = vpop.f32.mrf.mxu0
    %534 = vmatprep.mubr.bf16.mxu0 0
    %535 = vmatmul.mubr.bf16.gmra.mxu0 %v431
    %v536 = vpop.f32.mrf.mxu0
    %v537 = vadd.f32 0.0, %v536
    %v538 = vpop.f32.mrf.mxu0
    %v539 = vpop.f32.mrf.mxu0
    %v540 = vadd.f32 0.0, %v539
    %v541 = vpop.f32.mrf.mxu0
    %542 = vmatprep.mubr.bf16.mxu0 0
    %543 = vmatmul.mubr.bf16.gmra.mxu0 %v432
    %v544 = vpop.f32.mrf.mxu0
    %v545 = vadd.f32 0.0, %v544
    %v546 = vpop.f32.mrf.mxu0
    %v547 = vpop.f32.mrf.mxu0
    %v548 = vadd.f32 0.0, %v547
    %v549 = vpop.f32.mrf.mxu0
    %550 = vmatprep.mubr.bf16.mxu0 0
    %551 = vmatmul.mubr.bf16.gmra.mxu0 %v433
    %v552 = vpop.f32.mrf.mxu0
    %v553 = vadd.f32 0.0, %v552
    %v554 = vpop.f32.mrf.mxu0
    %v555 = vpop.f32.mrf.mxu0
    %v556 = vadd.f32 0.0, %v555
    %v557 = vpop.f32.mrf.mxu0
    %558 = vmatprep.mubr.bf16.mxu0 0
    %559 = vmatmul.mubr.bf16.gmra.mxu0 %v434
    %v560 = vpop.f32.mrf.mxu0
    %v561 = vadd.f32 0.0, %v560
    %v562 = vpop.f32.mrf.mxu0
    %v563 = vpop.f32.mrf.mxu0
    %v564 = vadd.f32 0.0, %v563
    %v565 = vpop.f32.mrf.mxu0
    %566 = vmatprep.mubr.bf16.mxu0 0
    %567 = vmatmul.mubr.bf16.gmra.mxu0 %v435
    %v568 = vpop.f32.mrf.mxu0
    %v569 = vadd.f32 0.0, %v568
    %v570 = vpop.f32.mrf.mxu0
    %v571 = vpop.f32.mrf.mxu0
    %v572 = vadd.f32 0.0, %v571
    %v573 = vpop.f32.mrf.mxu0
    %574 = vmatprep.mubr.bf16.mxu0 0
    %575 = vmatmul.mubr.bf16.gmra.mxu0 %v436
    %v576 = vpop.f32.mrf.mxu0
    %v577 = vadd.f32 0.0, %v576
    %v578 = vpop.f32.mrf.mxu0
    %v579 = vpop.f32.mrf.mxu0
    %v580 = vadd.f32 0.0, %v579
    %v581 = vpop.f32.mrf.mxu0
    %582 = vmatprep.mubr.bf16.mxu0 0
    %583 = vmatmul.mubr.bf16.gmra.mxu0 %v437
    %v584 = vpop.f32.mrf.mxu0
    %v585 = vadd.f32 0.0, %v584
    %v586 = vpop.f32.mrf.mxu0
    %v587 = vpop.f32.mrf.mxu0
    %v588 = vadd.f32 0.0, %v587
    %v589 = vpop.f32.mrf.mxu0
    %590 = vdwg.mxu0
    %v591 = vld [vmem:[#allocation10] sm:$0xff]
    %v592 = vld [vmem:[#allocation10 + $0x8] sm:$0xff]
    %v593 = vld [vmem:[#allocation10 + $0x10] sm:$0xff]
    %v594 = vld [vmem:[#allocation10 + $0x18] sm:$0xff]
    %v595 = vld [vmem:[#allocation10 + $0x20] sm:$0xff]
    %v596 = vld [vmem:[#allocation10 + $0x28] sm:$0xff]
    %v597 = vld [vmem:[#allocation10 + $0x30] sm:$0xff]
    %v598 = vld [vmem:[#allocation10 + $0x38] sm:$0xff]
    %v599 = vld [vmem:[#allocation10 + $0x40] sm:$0xff]
    %v600 = vld [vmem:[#allocation10 + $0x48] sm:$0xff]
    %v601 = vld [vmem:[#allocation10 + $0x50] sm:$0xff]
    %v602 = vld [vmem:[#allocation10 + $0x58] sm:$0xff]
    %v603 = vld [vmem:[#allocation10 + $0x60] sm:$0xff]
    %v604 = vld [vmem:[#allocation10 + $0x68] sm:$0xff]
    %v605 = vld [vmem:[#allocation10 + $0x70] sm:$0xff]
    %v606 = vld [vmem:[#allocation10 + $0x78] sm:$0xff]
    %v607 = vadd.f32 %v591, %v336
    %v608 = vadd.f32 %v592, %v339
    %v609 = vadd.f32 %v593, %v344
    %v610 = vadd.f32 %v594, %v347
    %v611 = vadd.f32 %v595, %v352
    %v612 = vadd.f32 %v596, %v355
    %v613 = vadd.f32 %v597, %v360
    %v614 = vadd.f32 %v598, %v363
    %v615 = vadd.f32 %v599, %v368
    %v616 = vadd.f32 %v600, %v371
    %v617 = vadd.f32 %v601, %v376
    %v618 = vadd.f32 %v602, %v379
    %v619 = vadd.f32 %v603, %v384
    %v620 = vadd.f32 %v604, %v387
    %v621 = vadd.f32 %v605, %v392
    %v622 = vadd.f32 %v606, %v395
    %623 = vst [vmem:[#allocation10] sm:$0xff] %v607
    %624 = vst [vmem:[#allocation10 + $0x8] sm:$0xff] %v608
    %625 = vst [vmem:[#allocation10 + $0x10] sm:$0xff] %v609
    %626 = vst [vmem:[#allocation10 + $0x18] sm:$0xff] %v610
    %627 = vst [vmem:[#allocation10 + $0x20] sm:$0xff] %v611
    %628 = vst [vmem:[#allocation10 + $0x28] sm:$0xff] %v612
    %629 = vst [vmem:[#allocation10 + $0x30] sm:$0xff] %v613
    %630 = vst [vmem:[#allocation10 + $0x38] sm:$0xff] %v614
    %631 = vst [vmem:[#allocation10 + $0x40] sm:$0xff] %v615
    %632 = vst [vmem:[#allocation10 + $0x48] sm:$0xff] %v616
    %633 = vst [vmem:[#allocation10 + $0x50] sm:$0xff] %v617
    %634 = vst [vmem:[#allocation10 + $0x58] sm:$0xff] %v618
    %635 = vst [vmem:[#allocation10 + $0x60] sm:$0xff] %v619
    %636 = vst [vmem:[#allocation10 + $0x68] sm:$0xff] %v620
    %637 = vst [vmem:[#allocation10 + $0x70] sm:$0xff] %v621
    %638 = vst [vmem:[#allocation10 + $0x78] sm:$0xff] %v622
    %v639 = vld [vmem:[#allocation11] sm:$0xff]
    %v640 = vld [vmem:[#allocation11 + $0x8] sm:$0xff]
    %v641 = vld [vmem:[#allocation11 + $0x10] sm:$0xff]
    %v642 = vld [vmem:[#allocation11 + $0x18] sm:$0xff]
    %v643 = vld [vmem:[#allocation11 + $0x20] sm:$0xff]
    %v644 = vld [vmem:[#allocation11 + $0x28] sm:$0xff]
    %v645 = vld [vmem:[#allocation11 + $0x30] sm:$0xff]
    %v646 = vld [vmem:[#allocation11 + $0x38] sm:$0xff]
    %v647 = vld [vmem:[#allocation11 + $0x40] sm:$0xff]
    %v648 = vld [vmem:[#allocation11 + $0x48] sm:$0xff]
    %v649 = vld [vmem:[#allocation11 + $0x50] sm:$0xff]
    %v650 = vld [vmem:[#allocation11 + $0x58] sm:$0xff]
    %v651 = vld [vmem:[#allocation11 + $0x60] sm:$0xff]
    %v652 = vld [vmem:[#allocation11 + $0x68] sm:$0xff]
    %v653 = vld [vmem:[#allocation11 + $0x70] sm:$0xff]
    %v654 = vld [vmem:[#allocation11 + $0x78] sm:$0xff]
    %v655 = vadd.f32 %v639, %v529
    %v656 = vadd.f32 %v640, %v532
    %v657 = vadd.f32 %v641, %v537
    %v658 = vadd.f32 %v642, %v540
    %v659 = vadd.f32 %v643, %v545
    %v660 = vadd.f32 %v644, %v548
    %v661 = vadd.f32 %v645, %v553
    %v662 = vadd.f32 %v646, %v556
    %v663 = vadd.f32 %v647, %v561
    %v664 = vadd.f32 %v648, %v564
    %v665 = vadd.f32 %v649, %v569
    %v666 = vadd.f32 %v650, %v572
    %v667 = vadd.f32 %v651, %v577
    %v668 = vadd.f32 %v652, %v580
    %v669 = vadd.f32 %v653, %v585
    %v670 = vadd.f32 %v654, %v588
    %671 = vst [vmem:[#allocation11] sm:$0xff] %v655
    %672 = vst [vmem:[#allocation11 + $0x8] sm:$0xff] %v656
    %673 = vst [vmem:[#allocation11 + $0x10] sm:$0xff] %v657
    %674 = vst [vmem:[#allocation11 + $0x18] sm:$0xff] %v658
    %675 = vst [vmem:[#allocation11 + $0x20] sm:$0xff] %v659
    %676 = vst [vmem:[#allocation11 + $0x28] sm:$0xff] %v660
    %677 = vst [vmem:[#allocation11 + $0x30] sm:$0xff] %v661
    %678 = vst [vmem:[#allocation11 + $0x38] sm:$0xff] %v662
    %679 = vst [vmem:[#allocation11 + $0x40] sm:$0xff] %v663
    %680 = vst [vmem:[#allocation11 + $0x48] sm:$0xff] %v664
    %681 = vst [vmem:[#allocation11 + $0x50] sm:$0xff] %v665
    %682 = vst [vmem:[#allocation11 + $0x58] sm:$0xff] %v666
    %683 = vst [vmem:[#allocation11 + $0x60] sm:$0xff] %v667
    %684 = vst [vmem:[#allocation11 + $0x68] sm:$0xff] %v668
    %685 = vst [vmem:[#allocation11 + $0x70] sm:$0xff] %v669
    %686 = vst [vmem:[#allocation11 + $0x78] sm:$0xff] %v670
    %v687 = vld [vmem:[#allocation10] sm:$0xff]
    %v688 = vld [vmem:[#allocation10 + $0x8] sm:$0xff]
    %v689 = vld [vmem:[#allocation10 + $0x10] sm:$0xff]
    %v690 = vld [vmem:[#allocation10 + $0x18] sm:$0xff]
    %v691 = vld [vmem:[#allocation10 + $0x20] sm:$0xff]
    %v692 = vld [vmem:[#allocation10 + $0x28] sm:$0xff]
    %v693 = vld [vmem:[#allocation10 + $0x30] sm:$0xff]
    %v694 = vld [vmem:[#allocation10 + $0x38] sm:$0xff]
    %v695 = vld [vmem:[#allocation10 + $0x40] sm:$0xff]
    %v696 = vld [vmem:[#allocation10 + $0x48] sm:$0xff]
    %v697 = vld [vmem:[#allocation10 + $0x50] sm:$0xff]
    %v698 = vld [vmem:[#allocation10 + $0x58] sm:$0xff]
    %v699 = vld [vmem:[#allocation10 + $0x60] sm:$0xff]
    %v700 = vld [vmem:[#allocation10 + $0x68] sm:$0xff]
    %v701 = vld [vmem:[#allocation10 + $0x70] sm:$0xff]
    %v702 = vld [vmem:[#allocation10 + $0x78] sm:$0xff]
    %v703 = vmul.f32 %v687, 0.5
    %v704 = vmul.f32 %v688, 0.5
    %v705 = vmul.f32 %v689, 0.5
    %v706 = vmul.f32 %v690, 0.5
    %v707 = vmul.f32 %v691, 0.5
    %v708 = vmul.f32 %v692, 0.5
    %v709 = vmul.f32 %v693, 0.5
    %v710 = vmul.f32 %v694, 0.5
    %v711 = vmul.f32 %v695, 0.5
    %v712 = vmul.f32 %v696, 0.5
    %v713 = vmul.f32 %v697, 0.5
    %v714 = vmul.f32 %v698, 0.5
    %v715 = vmul.f32 %v699, 0.5
    %v716 = vmul.f32 %v700, 0.5
    %v717 = vmul.f32 %v701, 0.5
    %v718 = vmul.f32 %v702, 0.5
    %719 = vst [vmem:[#allocation10] sm:$0xff] %v703
    %720 = vst [vmem:[#allocation10 + $0x8] sm:$0xff] %v704
    %721 = vst [vmem:[#allocation10 + $0x10] sm:$0xff] %v705
    %722 = vst [vmem:[#allocation10 + $0x18] sm:$0xff] %v706
    %723 = vst [vmem:[#allocation10 + $0x20] sm:$0xff] %v707
    %724 = vst [vmem:[#allocation10 + $0x28] sm:$0xff] %v708
    %725 = vst [vmem:[#allocation10 + $0x30] sm:$0xff] %v709
    %726 = vst [vmem:[#allocation10 + $0x38] sm:$0xff] %v710
    %727 = vst [vmem:[#allocation10 + $0x40] sm:$0xff] %v711
    %728 = vst [vmem:[#allocation10 + $0x48] sm:$0xff] %v712
    %729 = vst [vmem:[#allocation10 + $0x50] sm:$0xff] %v713
    %730 = vst [vmem:[#allocation10 + $0x58] sm:$0xff] %v714
    %731 = vst [vmem:[#allocation10 + $0x60] sm:$0xff] %v715
    %732 = vst [vmem:[#allocation10 + $0x68] sm:$0xff] %v716
    %733 = vst [vmem:[#allocation10 + $0x70] sm:$0xff] %v717
    %734 = vst [vmem:[#allocation10 + $0x78] sm:$0xff] %v718
    %v735 = vld [vmem:[#allocation11] sm:$0xff]
    %v736 = vld [vmem:[#allocation11 + $0x8] sm:$0xff]
    %v737 = vld [vmem:[#allocation11 + $0x10] sm:$0xff]
    %v738 = vld [vmem:[#allocation11 + $0x18] sm:$0xff]
    %v739 = vld [vmem:[#allocation11 + $0x20] sm:$0xff]
    %v740 = vld [vmem:[#allocation11 + $0x28] sm:$0xff]
    %v741 = vld [vmem:[#allocation11 + $0x30] sm:$0xff]
    %v742 = vld [vmem:[#allocation11 + $0x38] sm:$0xff]
    %v743 = vld [vmem:[#allocation11 + $0x40] sm:$0xff]
    %v744 = vld [vmem:[#allocation11 + $0x48] sm:$0xff]
    %v745 = vld [vmem:[#allocation11 + $0x50] sm:$0xff]
    %v746 = vld [vmem:[#allocation11 + $0x58] sm:$0xff]
    %v747 = vld [vmem:[#allocation11 + $0x60] sm:$0xff]
    %v748 = vld [vmem:[#allocation11 + $0x68] sm:$0xff]
    %v749 = vld [vmem:[#allocation11 + $0x70] sm:$0xff]
    %v750 = vld [vmem:[#allocation11 + $0x78] sm:$0xff]
    %v751 = vmul.f32 %v735, 0.5
    %v752 = vmul.f32 %v736, 0.5
    %v753 = vmul.f32 %v737, 0.5
    %v754 = vmul.f32 %v738, 0.5
    %v755 = vmul.f32 %v739, 0.5
    %v756 = vmul.f32 %v740, 0.5
    %v757 = vmul.f32 %v741, 0.5
    %v758 = vmul.f32 %v742, 0.5
    %v759 = vmul.f32 %v743, 0.5
    %v760 = vmul.f32 %v744, 0.5
    %v761 = vmul.f32 %v745, 0.5
    %v762 = vmul.f32 %v746, 0.5
    %v763 = vmul.f32 %v747, 0.5
    %v764 = vmul.f32 %v748, 0.5
    %v765 = vmul.f32 %v749, 0.5
    %v766 = vmul.f32 %v750, 0.5
    %v767 = vld [vmem:[#allocation8] sm:$0xf]
    %v768 = vld [vmem:[#allocation8 + $0x4] sm:$0xf]
    %v769 = vld [vmem:[#allocation8 + $0x8] sm:$0xf]
    %v770 = vld [vmem:[#allocation8 + $0xc] sm:$0xf]
    %v771 = vld [vmem:[#allocation8 + $0x10] sm:$0xf]
    %v772 = vld [vmem:[#allocation8 + $0x14] sm:$0xf]
    %v773 = vld [vmem:[#allocation8 + $0x18] sm:$0xf]
    %v774 = vld [vmem:[#allocation8 + $0x1c] sm:$0xf]
    %v775 = vld [vmem:[#allocation8 + $0x20] sm:$0xf]
    %v776 = vld [vmem:[#allocation8 + $0x24] sm:$0xf]
    %v777 = vld [vmem:[#allocation8 + $0x28] sm:$0xf]
    %v778 = vld [vmem:[#allocation8 + $0x2c] sm:$0xf]
    %v779 = vld [vmem:[#allocation8 + $0x30] sm:$0xf]
    %v780 = vld [vmem:[#allocation8 + $0x34] sm:$0xf]
    %v781 = vld [vmem:[#allocation8 + $0x38] sm:$0xf]
    %v782 = vld [vmem:[#allocation8 + $0x3c] sm:$0xf]
    %v783 = vunpack.c.l.bf16 %v767
    %v784 = vunpack.c.l.bf16 %v768
    %v785 = vunpack.c.l.bf16 %v769
    %v786 = vunpack.c.l.bf16 %v770
    %v787 = vunpack.c.l.bf16 %v771
    %v788 = vunpack.c.l.bf16 %v772
    %v789 = vunpack.c.l.bf16 %v773
    %v790 = vunpack.c.l.bf16 %v774
    %v791 = vunpack.c.l.bf16 %v775
    %v792 = vunpack.c.l.bf16 %v776
    %v793 = vunpack.c.l.bf16 %v777
    %v794 = vunpack.c.l.bf16 %v778
    %v795 = vunpack.c.l.bf16 %v779
    %v796 = vunpack.c.l.bf16 %v780
    %v797 = vunpack.c.l.bf16 %v781
    %v798 = vunpack.c.l.bf16 %v782
    %v799 = vadd.f32 %v751, %v783
    %v800 = vadd.f32 %v752, %v784
    %v801 = vadd.f32 %v753, %v785
    %v802 = vadd.f32 %v754, %v786
    %v803 = vadd.f32 %v755, %v787
    %v804 = vadd.f32 %v756, %v788
    %v805 = vadd.f32 %v757, %v789
    %v806 = vadd.f32 %v758, %v790
    %v807 = vadd.f32 %v759, %v791
    %v808 = vadd.f32 %v760, %v792
    %v809 = vadd.f32 %v761, %v793
    %v810 = vadd.f32 %v762, %v794
    %v811 = vadd.f32 %v763, %v795
    %v812 = vadd.f32 %v764, %v796
    %v813 = vadd.f32 %v765, %v797
    %v814 = vadd.f32 %v766, %v798
    %815 = vst [vmem:[#allocation11] sm:$0xff] %v799
    %816 = vst [vmem:[#allocation11 + $0x8] sm:$0xff] %v800
    %817 = vst [vmem:[#allocation11 + $0x10] sm:$0xff] %v801
    %818 = vst [vmem:[#allocation11 + $0x18] sm:$0xff] %v802
    %819 = vst [vmem:[#allocation11 + $0x20] sm:$0xff] %v803
    %820 = vst [vmem:[#allocation11 + $0x28] sm:$0xff] %v804
    %821 = vst [vmem:[#allocation11 + $0x30] sm:$0xff] %v805
    %822 = vst [vmem:[#allocation11 + $0x38] sm:$0xff] %v806
    %823 = vst [vmem:[#allocation11 + $0x40] sm:$0xff] %v807
    %824 = vst [vmem:[#allocation11 + $0x48] sm:$0xff] %v808
    %825 = vst [vmem:[#allocation11 + $0x50] sm:$0xff] %v809
    %826 = vst [vmem:[#allocation11 + $0x58] sm:$0xff] %v810
    %827 = vst [vmem:[#allocation11 + $0x60] sm:$0xff] %v811
    %828 = vst [vmem:[#allocation11 + $0x68] sm:$0xff] %v812
    %829 = vst [vmem:[#allocation11 + $0x70] sm:$0xff] %v813
    %830 = vst [vmem:[#allocation11 + $0x78] sm:$0xff] %v814
    // Predicated region
    $region34: #{tpu_custom_call.1} parent=1 // pred_check
      _
    $region35: #{tpu_custom_call.1} parent=1 // pred_check_branch
      %832 = sbr.rel (0) target = $region37
    $region36: #{tpu_custom_call.1} parent=1 // pred_region
      %s834 = ssub.s32 2048, 2048
      %835 = vsyncadd [#allocation4], %s834
      %s836 = sshll.u32 [#allocation10], 4
      %s837 = int_to_ptr.vmem [resolvable:$true] %s836
      %842 = dma.vmem_to_hbm [thread:$0]  %s837, 2048, %s4, [#allocation4], 128, 128, 8
    $region37: #{tpu_custom_call.1} parent=1 // pred_fallthru
      _
    // Predicated region
    $region38: #{tpu_custom_call.1} parent=1 // pred_check
      _
    $region39: #{tpu_custom_call.1} parent=1 // pred_check_branch
      %844 = sbr.rel (0) target = $region41
    $region40: #{tpu_custom_call.1} parent=1 // pred_region
      %s846 = ssub.s32 2048, 2048
      %847 = vsyncadd [#allocation12], %s846
      %s848 = sshll.u32 [#allocation11], 4
      %s849 = int_to_ptr.vmem [resolvable:$true] %s848
      %854 = dma.vmem_to_hbm [thread:$0]  %s849, 2048, %s5, [#allocation12], 128, 128, 8
    $region41: #{tpu_custom_call.1} parent=1 // pred_fallthru
      _
    // Predicated region
    $region42: #{tpu_custom_call.1} parent=1 // pred_check
      _
    $region43: #{tpu_custom_call.1} parent=1 // pred_check_branch
      %856 = sbr.rel (0) target = $region45
    $region44: #{tpu_custom_call.1} parent=1 // pred_region
      %857 = dma.done [#allocation4], 2048
    $region45: #{tpu_custom_call.1} parent=1 // pred_fallthru
      _
    // Predicated region
    $region46: #{tpu_custom_call.1} parent=1 // pred_check
      _
    $region47: #{tpu_custom_call.1} parent=1 // pred_check_branch
      %859 = sbr.rel (0) target = $region49
    $region48: #{tpu_custom_call.1} parent=1 // pred_region
      %860 = dma.done [#allocation12], 2048
    $region49: #{tpu_custom_call.1} parent=1 // pred_fallthru
      _
    %861 = vsyncpa [#allocation3], 1
    %862 = vsyncpa [#allocation6], 1
    %863 = vsyncpa [#allocation9], 1
    %864 = vsyncpa [#allocation4], 1
    %865 = vsyncpa [#allocation12], 1

</llo_original>
